<compile_context>
chip_gen: v7x
topology: tpu7x:2x2x1
jax: 0.10.0
libtpu: 0.0.40
codegen_flags: <defaults>
</compile_context>

<pallas_src>
import jax
import jax.numpy as jnp
from jax.experimental import pallas as pl
from jax.experimental.pallas import tpu as pltpu


def _round_up(x, m):
    return ((x + m - 1) // m) * m


def _pick_col_tile(dp, cap=1024):
    """Largest multiple-of-128 divisor of dp that is <= cap (dp % 128 == 0)."""
    if dp <= cap:
        return dp
    k = dp // 128
    best = 1
    for d in range(1, k + 1):
        if k % d == 0 and d * 128 <= cap:
            best = d
    return best * 128


def aggregator_kernel(e_ref, n_ref, w_ref, b_ref, o_ref):
    # add (VPU) -> matmul (MXU, f32 accumulate) -> bias + relu (VPU), fused
    # on the current (tm, Dp) x (Dp, tn) tile.
    combined = e_ref[...] + n_ref[...]
    out = jnp.dot(combined.astype(w_ref.dtype), w_ref[...],
                  preferred_element_type=jnp.float32)
    out = out + b_ref[...].astype(jnp.float32)      # b is (1, tn) -> broadcasts
    o_ref[...] = jnp.maximum(out, 0.0).astype(o_ref.dtype)


def aggregator_forward(entity, neighbor, w, b, *, tm=None, tn=None,
                       mxu_bf16=False):
    """entity, neighbor: (M, D); w: (D, D); b: (D,). Returns (M, D)."""
    M, D = entity.shape
    assert neighbor.shape == (M, D) and w.shape == (D, D) and b.shape == (D,)

    dtype = entity.dtype
    itemsize = jnp.dtype(dtype).itemsize

    # ---- lane-dense feature padding (multiple of 128) -----------------------
    Dp = max(128, _round_up(D, 128))

    # ---- row tiling: big tiles, ragged tail handled by padding --------------
    Mp8 = _round_up(M, 8)
    if tm is None:
        tm = min(512, Mp8)
    tm = _round_up(min(tm, Mp8), 8)
    Mp = _round_up(Mp8, tm)

    # ---- output-column tiling (only kicks in for very large D) --------------
    if tn is None:
        tn = _pick_col_tile(Dp)

    # Zero padding is exact (see header comment).
    e_p = jnp.pad(entity, ((0, Mp - M), (0, Dp - D)))
    n_p = jnp.pad(neighbor, ((0, Mp - M), (0, Dp - D)))
    w_p = jnp.pad(w, ((0, Dp - D), (0, Dp - D)))
    b_p = jnp.pad(b, (0, Dp - D)).reshape(1, Dp)
    if mxu_bf16:
        # bf16 operands, f32 accumulation (kernel casts `combined` to w dtype).
        w_p = w_p.astype(jnp.bfloat16)
    w_itemsize = jnp.dtype(w_p.dtype).itemsize

    grid = (Mp // tm, Dp // tn)

    # Single-buffer the weight/bias when they are grid-invariant and large —
    # halves their VMEM footprint at zero cost (never re-DMA'd).
    w_block_bytes = Dp * tn * w_itemsize
    w_pipeline = pl.Buffered(1) if (tn == Dp and w_block_bytes >= (4 << 20)) else None

    def _spec(shape, index_map, pipeline_mode=None):
        if pipeline_mode is None:
            return pl.BlockSpec(shape, index_map)
        return pl.BlockSpec(shape, index_map, pipeline_mode=pipeline_mode)

    in_specs = [
        pl.BlockSpec((tm, Dp), lambda i, j: (i, 0)),     # entity rows (full K)
        pl.BlockSpec((tm, Dp), lambda i, j: (i, 0)),     # neighbor rows
        _spec((Dp, tn), lambda i, j: (0, j), w_pipeline),  # weight column tile
        _spec((1, tn), lambda i, j: (0, j), w_pipeline),   # bias column tile
    ]
    out_spec = pl.BlockSpec((tm, tn), lambda i, j: (i, j))

    # VMEM footprint estimate -> raise the scoped limit only when needed.
    # TODO(synk): on v7x (64 MiB physical VMEM) shrink tm/tn if `est` > ~48 MiB.
    w_bufs = 1 if w_pipeline is not None else 2
    est = (2 * 2 * tm * Dp * itemsize                 # entity + neighbor (2x buffered)
           + 2 * tm * tn * itemsize                   # output (2x buffered)
           + w_bufs * (Dp * tn + tn) * w_itemsize)    # weight + bias
    vmem_limit = int(est * 1.25) if est > (32 << 20) else None

    compiler_params = pltpu.CompilerParams(
        dimension_semantics=("parallel", "parallel"),
        vmem_limit_bytes=vmem_limit,
    )

    cost = pl.CostEstimate(
        flops=2 * M * D * D + M * D,
        transcendentals=0,
        bytes_accessed=(3 * M * D + D * D + D) * itemsize,
    )

    out_p = pl.pallas_call(
        aggregator_kernel,
        out_shape=jax.ShapeDtypeStruct((Mp, Dp), dtype),
        grid_spec=pltpu.PrefetchScalarGridSpec(
            num_scalar_prefetch=0,
            grid=grid,
            in_specs=in_specs,
            out_specs=out_spec,
        ),
        compiler_params=compiler_params,
        cost_estimate=cost,
    )(e_p, n_p, w_p, b_p)

    return out_p[:M, :D]


def aggregator_reference(entity, neighbor, w, b):
    combined = entity + neighbor
    out = jnp.dot(combined, w) + b
    return jnp.maximum(out, 0.0)


if __name__ == "__main__":
    # Small shapes consistent with the module: rows = batch*neighborhood = 8,
    # input_dim = 32.
    M, D = 8, 32
    key = jax.random.PRNGKey(0)
    k_e, k_n, k_w = jax.random.split(key, 3)

    entity = jax.random.normal(k_e, (M, D), dtype=jnp.float32)
    neighbor = jax.random.normal(k_n, (M, D), dtype=jnp.float32)

    # Parameter init mirroring __init__: w ~ Normal(0, 0.01), b = zeros.
    w = 0.01 * jax.random.normal(k_w, (D, D), dtype=jnp.float32)
    b = jnp.zeros((D,), dtype=jnp.float32)

    out = aggregator_forward(entity, neighbor, w, b)
    out = jax.block_until_ready(out)

    ref = aggregator_reference(entity, neighbor, w, b)
    assert out.shape == (M, D)
    assert jnp.allclose(out, ref, atol=1e-5, rtol=1e-5)

    # Ragged-M check (exercises wrapper-side row padding + slice).
    M2 = 20
    k_e2, k_n2 = jax.random.split(jax.random.PRNGKey(1), 2)
    entity2 = jax.random.normal(k_e2, (M2, D), dtype=jnp.float32)
    neighbor2 = jax.random.normal(k_n2, (M2, D), dtype=jnp.float32)
    out2 = jax.block_until_ready(aggregator_forward(entity2, neighbor2, w, b))
    ref2 = aggregator_reference(entity2, neighbor2, w, b)
    assert out2.shape == (M2, D)
    assert jnp.allclose(out2, ref2, atol=1e-5, rtol=1e-5)

    print("KERNEL_OK")
</pallas_src>

<mosaic_0001>
module attributes {stable_mosaic.version = 11 : i64} {
  func.func @aggregator_kernel(%arg0: i32, %arg1: i32, %arg2: memref<8x128xf32, #tpu.memory_space<vmem>>, %arg3: memref<8x128xf32, #tpu.memory_space<vmem>>, %arg4: memref<128x128xf32, #tpu.memory_space<vmem>>, %arg5: memref<1x128xf32, #tpu.memory_space<vmem>>, %arg6: memref<8x128xf32, #tpu.memory_space<vmem>>) attributes {dimension_semantics = [#tpu.dimension_semantics<parallel>, #tpu.dimension_semantics<parallel>], iteration_bounds = array<i64: 1, 1>, scalar_prefetch = 0 : i64, scratch_operands = 0 : i64, tpu.core_type = #tpu.core_type<tc>, window_params = [{transform_indices = @transform_0, window_bounds = array<i64: 8, 128>}, {transform_indices = @transform_1, window_bounds = array<i64: 8, 128>}, {transform_indices = @transform_2, window_bounds = array<i64: 128, 128>}, {transform_indices = @transform_3, window_bounds = array<i64: 1, 128>}, {transform_indices = @transform_4, window_bounds = array<i64: 8, 128>}]} {
    %c0 = arith.constant 0 : index
    %c0_0 = arith.constant 0 : index
    %0 = vector.load %arg2[%c0, %c0_0] : memref<8x128xf32, #tpu.memory_space<vmem>>, vector<8x128xf32>
    %c0_1 = arith.constant 0 : index
    %c0_2 = arith.constant 0 : index
    %1 = vector.load %arg3[%c0_1, %c0_2] : memref<8x128xf32, #tpu.memory_space<vmem>>, vector<8x128xf32>
    %2 = arith.addf %0, %1 : vector<8x128xf32>
    %c0_3 = arith.constant 0 : index
    %c0_4 = arith.constant 0 : index
    %3 = vector.load %arg4[%c0_3, %c0_4] : memref<128x128xf32, #tpu.memory_space<vmem>>, vector<128x128xf32>
    %cst = arith.constant dense<0.000000e+00> : vector<8x128xf32>
    %4 = tpu.matmul %2, %3, %cst {dimension_numbers = #tpu.dot_dimension_numbers<[1], [0], [0], [1], [0, 0, 1, 1], [], []>} : vector<8x128xf32>, vector<128x128xf32>, vector<8x128xf32> -> vector<8x128xf32>
    %c0_5 = arith.constant 0 : index
    %c0_6 = arith.constant 0 : index
    %5 = vector.load %arg5[%c0_5, %c0_6] : memref<1x128xf32, #tpu.memory_space<vmem>>, vector<1x128xf32>
    %6 = vector.broadcast %5 : vector<1x128xf32> to vector<8x128xf32>
    %7 = arith.addf %4, %6 : vector<8x128xf32>
    %cst_7 = arith.constant 0.000000e+00 : f32
    %8 = vector.broadcast %cst_7 : f32 to vector<8x128xf32>
    %9 = arith.maximumf %7, %8 : vector<8x128xf32>
    %c0_8 = arith.constant 0 : index
    %c0_9 = arith.constant 0 : index
    %10 = vector.load %arg6[%c0_8, %c0_9] : memref<8x128xf32, #tpu.memory_space<vmem>>, vector<8x128xf32>
    tpu.vector_store %arg6[%c0_8, %c0_9], %9 {strides = array<i32>} : memref<8x128xf32, #tpu.memory_space<vmem>>, vector<8x128xf32>,
    return
  }
  func.func @transform_0(%arg0: i32, %arg1: i32) -> (i32, i32) {
    %c0_i32 = arith.constant 0 : i32
    %c0_i32_0 = arith.constant 0 : i32
    return %arg0, %c0_i32 : i32, i32
  }
  func.func @transform_1(%arg0: i32, %arg1: i32) -> (i32, i32) {
    %c0_i32 = arith.constant 0 : i32
    %c0_i32_0 = arith.constant 0 : i32
    return %arg0, %c0_i32 : i32, i32
  }
  func.func @transform_2(%arg0: i32, %arg1: i32) -> (i32, i32) {
    %c0_i32 = arith.constant 0 : i32
    %c0_i32_0 = arith.constant 0 : i32
    return %c0_i32, %arg1 : i32, i32
  }
  func.func @transform_3(%arg0: i32, %arg1: i32) -> (i32, i32) {
    %c0_i32 = arith.constant 0 : i32
    %c0_i32_0 = arith.constant 0 : i32
    return %c0_i32, %arg1 : i32, i32
  }
  func.func @transform_4(%arg0: i32, %arg1: i32) -> (i32, i32) {
    %c0_i32 = arith.constant 0 : i32
    return %arg0, %arg1 : i32, i32
  }
}

</mosaic_0001>

<llo_original>
// kernel: tpu_custom_call.1
$region0: #{tpu_custom_call.1}
  #allocation0 [shape = 'u32[]', space=smem, size = 0x4, offset = 0x4, fixed_abs, tag = 'smem constant byte address 0x4 - core index']
  #allocation1 [shape = 'u32[144,128]{1,0:T(1,128)}', space=vmem, size = 0x12000, scoped, tag = 'internal scratch']
  %s0 = inlined_call_operand.hbm [shape: f32[8,128], index: 0, kind: input, shape index: {}]
  %s1 = inlined_call_operand.hbm [shape: f32[8,128], index: 1, kind: input, shape index: {}]
  %s2 = inlined_call_operand.hbm [shape: f32[128,128], index: 2, kind: input, shape index: {}]
  %s3 = inlined_call_operand.vmem [shape: f32[1,128], index: 3, kind: input, shape index: {}]
  %s4 = inlined_call_operand.hbm [shape: f32[8,128], index: 4, kind: output, shape index: {}]
  %s5 = sld [smem:[#allocation0]]
  $region38: #{tpu_custom_call.1} parent=0
    _
  %s7 = ssub.s32 1, %s5
  %s8 = scalar_select 0, %s7, %s5
  $region1: #{tpu_custom_call.1} parent=0
    #allocation2 [shape = 'u8[4096]{0}', space=vmem, size = 0x1000, scoped, tag = 'input window, operand 0, single buffered']
    #allocation3 [shape = 's32[1]{0}', space=sflag, size = 0x4, scoped, tag = 'scoped memory for tpu_custom_call.1']
    #allocation4 [shape = 's32[1]{0}', space=sflag, size = 0x4, scoped, tag = 'scoped memory for tpu_custom_call.1']
    #allocation5 [shape = 'u8[4096]{0}', space=vmem, size = 0x1000, scoped, tag = 'input window, operand 1, single buffered']
    #allocation6 [shape = 's32[1]{0}', space=sflag, size = 0x4, scoped, tag = 'scoped memory for tpu_custom_call.1']
    #allocation7 [shape = 'u8[65536]{0}', space=vmem, size = 0x10000, scoped, tag = 'input window, operand 2, single buffered']
    #allocation8 [shape = 'u8[4096]{0}', space=vmem, size = 0x1000, scoped, tag = 'output window, operand 0, single buffered']
    %9 = vsyncpa [#allocation3], 0
    %10 = vsyncpa [#allocation6], 0
    %11 = vsyncpa [#allocation4], 0
    // Predicated region
    $region2: #{tpu_custom_call.1} parent=1 // pred_check
      _
    $region3: #{tpu_custom_call.1} parent=1 // pred_check_branch
      %13 = sbr.rel (0) target = $region5
    $region4: #{tpu_custom_call.1} parent=1 // pred_region
      %s15 = ssub.s32 128, 128
      %16 = vsyncadd [#allocation3], %s15
      %s18 = sshll.u32 [#allocation2], 4
      %s19 = int_to_ptr.vmem [resolvable:$true] %s18
      %21 = dma.hbm_to_vmem [thread:$0]  %s0, 128, %s19, [#allocation3]
    $region5: #{tpu_custom_call.1} parent=1 // pred_fallthru
      _
    // Predicated region
    $region6: #{tpu_custom_call.1} parent=1 // pred_check
      _
    $region7: #{tpu_custom_call.1} parent=1 // pred_check_branch
      %23 = sbr.rel (0) target = $region9
    $region8: #{tpu_custom_call.1} parent=1 // pred_region
      %s25 = ssub.s32 128, 128
      %26 = vsyncadd [#allocation6], %s25
      %s28 = sshll.u32 [#allocation5], 4
      %s29 = int_to_ptr.vmem [resolvable:$true] %s28
      %31 = dma.hbm_to_vmem [thread:$0]  %s1, 128, %s29, [#allocation6]
    $region9: #{tpu_custom_call.1} parent=1 // pred_fallthru
      _
    // Predicated region
    $region10: #{tpu_custom_call.1} parent=1 // pred_check
      _
    $region11: #{tpu_custom_call.1} parent=1 // pred_check_branch
      %33 = sbr.rel (0) target = $region13
    $region12: #{tpu_custom_call.1} parent=1 // pred_region
      %s35 = ssub.s32 2048, 2048
      %36 = vsyncadd [#allocation6], %s35
      %s37 = sshll.u32 [#allocation7], 4
      %s38 = int_to_ptr.vmem [resolvable:$true] %s37
      %43 = dma.hbm_to_vmem [thread:$0]  %s2, 2048, %s38, [#allocation6], 128, 128, 8
    $region13: #{tpu_custom_call.1} parent=1 // pred_fallthru
      _
    // Predicated region
    $region14: #{tpu_custom_call.1} parent=1 // pred_check
      _
    $region15: #{tpu_custom_call.1} parent=1 // pred_check_branch
      %45 = sbr.rel (0) target = $region17
    $region16: #{tpu_custom_call.1} parent=1 // pred_region
      _
    $region17: #{tpu_custom_call.1} parent=1 // pred_fallthru
      _
    // Predicated region
    $region18: #{tpu_custom_call.1} parent=1 // pred_check
      _
    $region19: #{tpu_custom_call.1} parent=1 // pred_check_branch
      %47 = sbr.rel (0) target = $region21
    $region20: #{tpu_custom_call.1} parent=1 // pred_region
      %48 = dma.done [#allocation3], 128
    $region21: #{tpu_custom_call.1} parent=1 // pred_fallthru
      _
    // Predicated region
    $region22: #{tpu_custom_call.1} parent=1 // pred_check
      _
    $region23: #{tpu_custom_call.1} parent=1 // pred_check_branch
      %50 = sbr.rel (0) target = $region25
    $region24: #{tpu_custom_call.1} parent=1 // pred_region
      %51 = dma.done [#allocation6], 128
    $region25: #{tpu_custom_call.1} parent=1 // pred_fallthru
      _
    // Predicated region
    $region26: #{tpu_custom_call.1} parent=1 // pred_check
      _
    $region27: #{tpu_custom_call.1} parent=1 // pred_check_branch
      %53 = sbr.rel (0) target = $region29
    $region28: #{tpu_custom_call.1} parent=1 // pred_region
      %54 = dma.done [#allocation6], 2048
    $region29: #{tpu_custom_call.1} parent=1 // pred_fallthru
      _
    %v55 = vld [vmem:[#allocation2] sm:$0xff]
    %v56 = vld [vmem:[#allocation5] sm:$0xff]
    %v57 = vadd.f32 %v55, %v56
    %v58 = vld [vmem:[#allocation7] sm:$0xff]
    %v59 = vld [vmem:[#allocation7 + $0x8] sm:$0xff]
    %v60 = vld [vmem:[#allocation7 + $0x10] sm:$0xff]
    %v61 = vld [vmem:[#allocation7 + $0x18] sm:$0xff]
    %v62 = vld [vmem:[#allocation7 + $0x20] sm:$0xff]
    %v63 = vld [vmem:[#allocation7 + $0x28] sm:$0xff]
    %v64 = vld [vmem:[#allocation7 + $0x30] sm:$0xff]
    %v65 = vld [vmem:[#allocation7 + $0x38] sm:$0xff]
    %v66 = vld [vmem:[#allocation7 + $0x40] sm:$0xff]
    %v67 = vld [vmem:[#allocation7 + $0x48] sm:$0xff]
    %v68 = vld [vmem:[#allocation7 + $0x50] sm:$0xff]
    %v69 = vld [vmem:[#allocation7 + $0x58] sm:$0xff]
    %v70 = vld [vmem:[#allocation7 + $0x60] sm:$0xff]
    %v71 = vld [vmem:[#allocation7 + $0x68] sm:$0xff]
    %v72 = vld [vmem:[#allocation7 + $0x70] sm:$0xff]
    %v73 = vld [vmem:[#allocation7 + $0x78] sm:$0xff]
    %v74 = vld [vmem:[%s3] sm:$0x1]
    %v76 = vlaneseq
    %v77 = vshrl.u32 %v76, 7
    %v78 = vsub.s32 0, %v77
    %v79 = vrot.slane %v74, %v78
    %81 = vmatprep.subr.mxu0 0.0
    %82 = vmatpush1.msra.mxu0 %v58
    %83 = vmatprep.subr.mxu0 0.0
    %84 = vmatpush1.msra.mxu0 %v59
    %85 = vmatprep.subr.mxu0 0.0
    %86 = vmatpush1.msra.mxu0 %v60
    %87 = vmatprep.subr.mxu0 0.0
    %88 = vmatpush1.msra.mxu0 %v61
    %89 = vmatprep.subr.mxu0 0.0
    %90 = vmatpush1.msra.mxu0 %v62
    %91 = vmatprep.subr.mxu0 0.0
    %92 = vmatpush1.msra.mxu0 %v63
    %93 = vmatprep.subr.mxu0 0.0
    %94 = vmatpush1.msra.mxu0 %v64
    %95 = vmatprep.subr.mxu0 0.0
    %96 = vmatpush1.msra.mxu0 %v65
    %97 = vmatprep.subr.mxu0 0.0
    %98 = vmatpush1.msra.mxu0 %v66
    %99 = vmatprep.subr.mxu0 0.0
    %100 = vmatpush1.msra.mxu0 %v67
    %101 = vmatprep.subr.mxu0 0.0
    %102 = vmatpush1.msra.mxu0 %v68
    %103 = vmatprep.subr.mxu0 0.0
    %104 = vmatpush1.msra.mxu0 %v69
    %105 = vmatprep.subr.mxu0 0.0
    %106 = vmatpush1.msra.mxu0 %v70
    %107 = vmatprep.subr.mxu0 0.0
    %108 = vmatpush1.msra.mxu0 %v71
    %109 = vmatprep.subr.mxu0 0.0
    %110 = vmatpush1.msra.mxu0 %v72
    %111 = vmatprep.subr.mxu0 0.0
    %112 = vmatpush1.msra.mxu0 %v73
    %113 = vmatprep.subr.mxu0 0.0
    %114 = vmatpush1.msra.mxu0 0.0
    %115 = vmatprep.subr.mxu0 0.0
    %116 = vmatpush1.msra.mxu0 0.0
    %117 = vmatprep.subr.mxu0 0.0
    %118 = vmatpush1.msra.mxu0 0.0
    %119 = vmatprep.subr.mxu0 0.0
    %120 = vmatpush1.msra.mxu0 0.0
    %121 = vmatprep.subr.mxu0 0.0
    %122 = vmatpush1.msra.mxu0 0.0
    %123 = vmatprep.subr.mxu0 0.0
    %124 = vmatpush1.msra.mxu0 0.0
    %125 = vmatprep.subr.mxu0 0.0
    %126 = vmatpush1.msra.mxu0 0.0
    %127 = vmatprep.subr.mxu0 0.0
    %128 = vmatpush1.msra.mxu0 0.0
    %129 = vmatprep.subr.mxu0 0.0
    %130 = vmatpush1.msra.mxu0 0.0
    %131 = vmatprep.subr.mxu0 0.0
    %132 = vmatpush1.msra.mxu0 0.0
    %133 = vmatprep.subr.mxu0 0.0
    %134 = vmatpush1.msra.mxu0 0.0
    %135 = vmatprep.subr.mxu0 0.0
    %136 = vmatpush1.msra.mxu0 0.0
    %137 = vmatprep.subr.mxu0 0.0
    %138 = vmatpush1.msra.mxu0 0.0
    %139 = vmatprep.subr.mxu0 0.0
    %140 = vmatpush1.msra.mxu0 0.0
    %141 = vmatprep.subr.mxu0 0.0
    %142 = vmatpush1.msra.mxu0 0.0
    %143 = vmatprep.subr.mxu0 0.0
    %144 = vmatpush1.msra.mxu0 0.0
    %145 = vmatprep.mubr.f32.mxu0 0.0
    %146 = vmatmul.mubr.f32.gmra.mrb[0].mxu0 %v57
    %v147 = vpop.f32.mrb[0].mxu0
    %v148 = vadd.f32 %v79, %v147
    %v149 = vpop.f32.mrb[0].mxu0
    %150 = vdwg.mxu0
    %v151 = vmax.f32 %v148, 0.0
    %152 = vst [vmem:[#allocation8] sm:$0xff] %v151
    // Predicated region
    $region30: #{tpu_custom_call.1} parent=1 // pred_check
      _
    $region31: #{tpu_custom_call.1} parent=1 // pred_check_branch
      %154 = sbr.rel (0) target = $region33
    $region32: #{tpu_custom_call.1} parent=1 // pred_region
      %s156 = ssub.s32 128, 128
      %157 = vsyncadd [#allocation4], %s156
      %s159 = sshll.u32 [#allocation8], 4
      %s160 = int_to_ptr.vmem [resolvable:$true] %s159
      %162 = dma.vmem_to_hbm [thread:$0]  %s160, 128, %s4, [#allocation4]
    $region33: #{tpu_custom_call.1} parent=1 // pred_fallthru
      _
    // Predicated region
    $region34: #{tpu_custom_call.1} parent=1 // pred_check
      _
    $region35: #{tpu_custom_call.1} parent=1 // pred_check_branch
      %164 = sbr.rel (0) target = $region37
    $region36: #{tpu_custom_call.1} parent=1 // pred_region
      %165 = dma.done [#allocation4], 128
    $region37: #{tpu_custom_call.1} parent=1 // pred_fallthru
      _
    %166 = vsyncpa [#allocation3], 1
    %167 = vsyncpa [#allocation6], 1
    %168 = vsyncpa [#allocation4], 1

</llo_original>
